<compile_context>
chip_gen: v5e
topology: v5e:2x2
jax: 0.10.0
libtpu: 0.0.40
codegen_flags: <defaults>
</compile_context>

<pallas_src>
import functools

import jax
import jax.numpy as jnp
from jax.experimental import pallas as pl
from jax.experimental.pallas import tpu as pltpu

INPUT_DIM = 9
H1, H2, H3, OUT = 64, 128, 64, 2
DEFAULT_BATCH_TILE = 256  # lanes per grid step; must be a multiple of 128


def _mlp_kernel(xT_ref, w1_ref, b1_ref, w2_ref, b2_ref, w3_ref, b3_ref,
                w4_ref, b4_ref, oT_ref):
    # Weights/biases are VMEM-resident across the whole grid; only the (9, T)
    # input tile and the (2, T) output tile are streamed per step.
    h = xT_ref[...].astype(jnp.bfloat16)                                   # (9,   T)

    h = jnp.dot(w1_ref[...], h, preferred_element_type=jnp.float32) + b1_ref[...]
    h = jnp.maximum(h, 0.0).astype(jnp.bfloat16)                           # (64,  T)

    h = jnp.dot(w2_ref[...], h, preferred_element_type=jnp.float32) + b2_ref[...]
    h = jnp.maximum(h, 0.0).astype(jnp.bfloat16)                           # (128, T)

    h = jnp.dot(w3_ref[...], h, preferred_element_type=jnp.float32) + b3_ref[...]
    h = jnp.maximum(h, 0.0).astype(jnp.bfloat16)                           # (64,  T)

    y = jnp.dot(w4_ref[...], h, preferred_element_type=jnp.float32) + b4_ref[...]
    oT_ref[...] = y.astype(oT_ref.dtype)                                   # (2,   T)


@functools.partial(jax.jit, static_argnames=("batch_tile",))
def position_net_forward(x, params, *, batch_tile=DEFAULT_BATCH_TILE):
    """x: (B, 9) float32.  params: PyTorch-layout w{i}: (out, in), b{i}: (out, 1)."""
    B, D = x.shape
    assert D == INPUT_DIM
    assert batch_tile % 128 == 0

    # Pad batch to a multiple of batch_tile; the padded tail is discarded below.
    b_pad = max(batch_tile, ((B + batch_tile - 1) // batch_tile) * batch_tile)
    xT = jnp.pad(x, ((0, b_pad - B), (0, 0))).T                            # (9, b_pad)

    # bf16 matmul operands; biases stay f32 for the epilogue.
    w1, w2, w3, w4 = (params[k].astype(jnp.bfloat16) for k in ("w1", "w2", "w3", "w4"))
    b1, b2, b3, b4 = (params[k] for k in ("b1", "b2", "b3", "b4"))

    # Grid-invariant (weight/bias) operand: full block, constant index_map.
    full = lambda a: pl.BlockSpec(a.shape, lambda i: (0, 0))

    oT = pl.pallas_call(
        _mlp_kernel,
        out_shape=jax.ShapeDtypeStruct((OUT, b_pad), x.dtype),
        grid_spec=pltpu.PrefetchScalarGridSpec(
            num_scalar_prefetch=0,
            grid=(b_pad // batch_tile,),
            in_specs=[
                pl.BlockSpec((INPUT_DIM, batch_tile), lambda i: (0, i)),  # x tile
                full(w1), full(b1),
                full(w2), full(b2),
                full(w3), full(b3),
                full(w4), full(b4),
            ],
            out_specs=pl.BlockSpec((OUT, batch_tile), lambda i: (0, i)),
        ),
        compiler_params=pltpu.CompilerParams(
            dimension_semantics=("parallel",),
        ),
    )(xT, w1, b1, w2, b2, w3, b3, w4, b4)

    return oT[:, :B].T  # back to (B, 2)


def init_params(key):
    """Deterministic init mimicking PyTorch nn.Linear default (U[-1/sqrt(fan_in), +]).

    Weights stored PyTorch-style as (out_features, in_features); biases as (out, 1).
    """
    dims = [(INPUT_DIM, H1), (H1, H2), (H2, H3), (H3, OUT)]
    params = {}
    keys = jax.random.split(key, 2 * len(dims))
    for idx, (fan_in, fan_out) in enumerate(dims):
        bound = 1.0 / (fan_in ** 0.5)
        w = jax.random.uniform(keys[2 * idx], (fan_out, fan_in),
                               minval=-bound, maxval=bound, dtype=jnp.float32)
        b = jax.random.uniform(keys[2 * idx + 1], (fan_out, 1),
                               minval=-bound, maxval=bound, dtype=jnp.float32)
        params[f"w{idx + 1}"] = w
        params[f"b{idx + 1}"] = b
    return params


def _reference_forward_f32(x, params):
    """Plain f32 reference matching PyTorch semantics: y = x @ W.T + b."""
    lin = lambda h, w, b: h @ w.T + b[:, 0]
    h = jnp.maximum(lin(x, params["w1"], params["b1"]), 0.0)
    h = jnp.maximum(lin(h, params["w2"], params["b2"]), 0.0)
    h = jnp.maximum(lin(h, params["w3"], params["b3"]), 0.0)
    return lin(h, params["w4"], params["b4"])


def _reference_forward_bf16(x, params):
    """Reference with the same bf16-operand / f32-accumulate casts as the kernel."""
    def lin(h, w, b):
        return jnp.dot(h.astype(jnp.bfloat16), w.astype(jnp.bfloat16).T,
                       preferred_element_type=jnp.float32) + b[:, 0]
    h = jnp.maximum(lin(x, params["w1"], params["b1"]), 0.0)
    h = jnp.maximum(lin(h, params["w2"], params["b2"]), 0.0)
    h = jnp.maximum(lin(h, params["w3"], params["b3"]), 0.0)
    return lin(h, params["w4"], params["b4"])


if __name__ == "__main__":
    key = jax.random.PRNGKey(0)
    k_param, k_x = jax.random.split(key)

    params = init_params(k_param)
    # Non-multiple batch on purpose: exercises the pad-to-tile path
    # (300 -> 512 = two grid steps -> both v7x TensorCores fed).
    B = 300
    x = jax.random.normal(k_x, (B, INPUT_DIM), dtype=jnp.float32)

    out = position_net_forward(x, params)
    out = jax.block_until_ready(out)
    assert out.shape == (B, OUT), f"bad output shape {out.shape}"

    ref_bf16 = _reference_forward_bf16(x, params)   # same casts as the kernel
    ref_f32 = _reference_forward_f32(x, params)     # exact PyTorch semantics
    assert jnp.allclose(out, ref_bf16, atol=2e-2, rtol=2e-2), \
        "mismatch vs bf16-matched reference"
    assert jnp.allclose(out, ref_f32, atol=1e-1, rtol=1e-1), \
        "mismatch vs f32 reference"

    print("KERNEL_OK")
</pallas_src>

<mosaic_0001>
module attributes {stable_mosaic.version = 11 : i64} {
  func.func @_mlp_kernel(%arg0: i32, %arg1: memref<9x256xf32, #tpu.memory_space<vmem>>, %arg2: memref<64x9xbf16, #tpu.memory_space<vmem>>, %arg3: memref<64x1xf32, #tpu.memory_space<vmem>>, %arg4: memref<128x64xbf16, #tpu.memory_space<vmem>>, %arg5: memref<128x1xf32, #tpu.memory_space<vmem>>, %arg6: memref<64x128xbf16, #tpu.memory_space<vmem>>, %arg7: memref<64x1xf32, #tpu.memory_space<vmem>>, %arg8: memref<2x64xbf16, #tpu.memory_space<vmem>>, %arg9: memref<2x1xf32, #tpu.memory_space<vmem>>, %arg10: memref<2x256xf32, #tpu.memory_space<vmem>>) attributes {dimension_semantics = [#tpu.dimension_semantics<parallel>], iteration_bounds = array<i64: 2>, scalar_prefetch = 0 : i64, scratch_operands = 0 : i64, tpu.core_type = #tpu.core_type<tc>, window_params = [{transform_indices = @transform_0, window_bounds = array<i64: 9, 256>}, {pipeline_mode = #tpu.pipeline_mode<synchronous>, transform_indices = @transform_1, window_bounds = array<i64: 64, 9>}, {pipeline_mode = #tpu.pipeline_mode<synchronous>, transform_indices = @transform_2, window_bounds = array<i64: 64, 1>}, {pipeline_mode = #tpu.pipeline_mode<synchronous>, transform_indices = @transform_3, window_bounds = array<i64: 128, 64>}, {pipeline_mode = #tpu.pipeline_mode<synchronous>, transform_indices = @transform_4, window_bounds = array<i64: 128, 1>}, {pipeline_mode = #tpu.pipeline_mode<synchronous>, transform_indices = @transform_5, window_bounds = array<i64: 64, 128>}, {pipeline_mode = #tpu.pipeline_mode<synchronous>, transform_indices = @transform_6, window_bounds = array<i64: 64, 1>}, {pipeline_mode = #tpu.pipeline_mode<synchronous>, transform_indices = @transform_7, window_bounds = array<i64: 2, 64>}, {pipeline_mode = #tpu.pipeline_mode<synchronous>, transform_indices = @transform_8, window_bounds = array<i64: 2, 1>}, {transform_indices = @transform_9, window_bounds = array<i64: 2, 256>}]} {
    %c0 = arith.constant 0 : index
    %c0_0 = arith.constant 0 : index
    %0 = vector.load %arg1[%c0, %c0_0] : memref<9x256xf32, #tpu.memory_space<vmem>>, vector<9x256xf32>
    %1 = arith.truncf %0 : vector<9x256xf32> to vector<9x256xbf16>
    %c0_1 = arith.constant 0 : index
    %c0_2 = arith.constant 0 : index
    %2 = vector.load %arg2[%c0_1, %c0_2] : memref<64x9xbf16, #tpu.memory_space<vmem>>, vector<64x9xbf16>
    %cst = arith.constant dense<0.000000e+00> : vector<64x256xf32>
    %3 = tpu.matmul %2, %1, %cst {dimension_numbers = #tpu.dot_dimension_numbers<[1], [0], [0], [1], [0, 0, 1, 1], [], []>} : vector<64x9xbf16>, vector<9x256xbf16>, vector<64x256xf32> -> vector<64x256xf32>
    %c0_3 = arith.constant 0 : index
    %c0_4 = arith.constant 0 : index
    %4 = vector.load %arg3[%c0_3, %c0_4] : memref<64x1xf32, #tpu.memory_space<vmem>>, vector<64x1xf32>
    %5 = vector.broadcast %4 : vector<64x1xf32> to vector<64x256xf32>
    %6 = arith.addf %3, %5 : vector<64x256xf32>
    %cst_5 = arith.constant 0.000000e+00 : f32
    %7 = vector.broadcast %cst_5 : f32 to vector<64x256xf32>
    %8 = arith.maximumf %6, %7 : vector<64x256xf32>
    %9 = arith.truncf %8 : vector<64x256xf32> to vector<64x256xbf16>
    %c0_6 = arith.constant 0 : index
    %c0_7 = arith.constant 0 : index
    %10 = vector.load %arg4[%c0_6, %c0_7] : memref<128x64xbf16, #tpu.memory_space<vmem>>, vector<128x64xbf16>
    %cst_8 = arith.constant dense<0.000000e+00> : vector<128x256xf32>
    %11 = tpu.matmul %10, %9, %cst_8 {dimension_numbers = #tpu.dot_dimension_numbers<[1], [0], [0], [1], [0, 0, 1, 1], [], []>} : vector<128x64xbf16>, vector<64x256xbf16>, vector<128x256xf32> -> vector<128x256xf32>
    %c0_9 = arith.constant 0 : index
    %c0_10 = arith.constant 0 : index
    %12 = vector.load %arg5[%c0_9, %c0_10] : memref<128x1xf32, #tpu.memory_space<vmem>>, vector<128x1xf32>
    %13 = vector.broadcast %12 : vector<128x1xf32> to vector<128x256xf32>
    %14 = arith.addf %11, %13 : vector<128x256xf32>
    %cst_11 = arith.constant 0.000000e+00 : f32
    %15 = vector.broadcast %cst_11 : f32 to vector<128x256xf32>
    %16 = arith.maximumf %14, %15 : vector<128x256xf32>
    %17 = arith.truncf %16 : vector<128x256xf32> to vector<128x256xbf16>
    %c0_12 = arith.constant 0 : index
    %c0_13 = arith.constant 0 : index
    %18 = vector.load %arg6[%c0_12, %c0_13] : memref<64x128xbf16, #tpu.memory_space<vmem>>, vector<64x128xbf16>
    %cst_14 = arith.constant dense<0.000000e+00> : vector<64x256xf32>
    %19 = tpu.matmul %18, %17, %cst_14 {dimension_numbers = #tpu.dot_dimension_numbers<[1], [0], [0], [1], [0, 0, 1, 1], [], []>} : vector<64x128xbf16>, vector<128x256xbf16>, vector<64x256xf32> -> vector<64x256xf32>
    %c0_15 = arith.constant 0 : index
    %c0_16 = arith.constant 0 : index
    %20 = vector.load %arg7[%c0_15, %c0_16] : memref<64x1xf32, #tpu.memory_space<vmem>>, vector<64x1xf32>
    %21 = vector.broadcast %20 : vector<64x1xf32> to vector<64x256xf32>
    %22 = arith.addf %19, %21 : vector<64x256xf32>
    %cst_17 = arith.constant 0.000000e+00 : f32
    %23 = vector.broadcast %cst_17 : f32 to vector<64x256xf32>
    %24 = arith.maximumf %22, %23 : vector<64x256xf32>
    %25 = arith.truncf %24 : vector<64x256xf32> to vector<64x256xbf16>
    %c0_18 = arith.constant 0 : index
    %c0_19 = arith.constant 0 : index
    %26 = vector.load %arg8[%c0_18, %c0_19] : memref<2x64xbf16, #tpu.memory_space<vmem>>, vector<2x64xbf16>
    %cst_20 = arith.constant dense<0.000000e+00> : vector<2x256xf32>
    %27 = tpu.matmul %26, %25, %cst_20 {dimension_numbers = #tpu.dot_dimension_numbers<[1], [0], [0], [1], [0, 0, 1, 1], [], []>} : vector<2x64xbf16>, vector<64x256xbf16>, vector<2x256xf32> -> vector<2x256xf32>
    %c0_21 = arith.constant 0 : index
    %c0_22 = arith.constant 0 : index
    %28 = vector.load %arg9[%c0_21, %c0_22] : memref<2x1xf32, #tpu.memory_space<vmem>>, vector<2x1xf32>
    %29 = vector.broadcast %28 : vector<2x1xf32> to vector<2x256xf32>
    %30 = arith.addf %27, %29 : vector<2x256xf32>
    %c0_23 = arith.constant 0 : index
    %c0_24 = arith.constant 0 : index
    %31 = vector.load %arg10[%c0_23, %c0_24] : memref<2x256xf32, #tpu.memory_space<vmem>>, vector<2x256xf32>
    tpu.vector_store %arg10[%c0_23, %c0_24], %30 {strides = array<i32>} : memref<2x256xf32, #tpu.memory_space<vmem>>, vector<2x256xf32>,
    return
  }
  func.func @transform_0(%arg0: i32) -> (i32, i32) {
    %c0_i32 = arith.constant 0 : i32
    %c0_i32_0 = arith.constant 0 : i32
    return %c0_i32, %arg0 : i32, i32
  }
  func.func @transform_1(%arg0: i32) -> (i32, i32) {
    %c0_i32 = arith.constant 0 : i32
    %c0_i32_0 = arith.constant 0 : i32
    %c0_i32_1 = arith.constant 0 : i32
    return %c0_i32, %c0_i32_0 : i32, i32
  }
  func.func @transform_2(%arg0: i32) -> (i32, i32) {
    %c0_i32 = arith.constant 0 : i32
    %c0_i32_0 = arith.constant 0 : i32
    %c0_i32_1 = arith.constant 0 : i32
    return %c0_i32, %c0_i32_0 : i32, i32
  }
  func.func @transform_3(%arg0: i32) -> (i32, i32) {
    %c0_i32 = arith.constant 0 : i32
    %c0_i32_0 = arith.constant 0 : i32
    %c0_i32_1 = arith.constant 0 : i32
    return %c0_i32, %c0_i32_0 : i32, i32
  }
  func.func @transform_4(%arg0: i32) -> (i32, i32) {
    %c0_i32 = arith.constant 0 : i32
    %c0_i32_0 = arith.constant 0 : i32
    %c0_i32_1 = arith.constant 0 : i32
    return %c0_i32, %c0_i32_0 : i32, i32
  }
  func.func @transform_5(%arg0: i32) -> (i32, i32) {
    %c0_i32 = arith.constant 0 : i32
    %c0_i32_0 = arith.constant 0 : i32
    %c0_i32_1 = arith.constant 0 : i32
    return %c0_i32, %c0_i32_0 : i32, i32
  }
  func.func @transform_6(%arg0: i32) -> (i32, i32) {
    %c0_i32 = arith.constant 0 : i32
    %c0_i32_0 = arith.constant 0 : i32
    %c0_i32_1 = arith.constant 0 : i32
    return %c0_i32, %c0_i32_0 : i32, i32
  }
  func.func @transform_7(%arg0: i32) -> (i32, i32) {
    %c0_i32 = arith.constant 0 : i32
    %c0_i32_0 = arith.constant 0 : i32
    %c0_i32_1 = arith.constant 0 : i32
    return %c0_i32, %c0_i32_0 : i32, i32
  }
  func.func @transform_8(%arg0: i32) -> (i32, i32) {
    %c0_i32 = arith.constant 0 : i32
    %c0_i32_0 = arith.constant 0 : i32
    %c0_i32_1 = arith.constant 0 : i32
    return %c0_i32, %c0_i32_0 : i32, i32
  }
  func.func @transform_9(%arg0: i32) -> (i32, i32) {
    %c0_i32 = arith.constant 0 : i32
    %c0_i32_0 = arith.constant 0 : i32
    return %c0_i32, %arg0 : i32, i32
  }
}

</mosaic_0001>

<llo_original>
// kernel: position_net_forward.1
$region0: #{position_net_forward.1}
  #allocation0 [shape = 'u32[]', space=smem, size = 0x4, offset = 0x4, fixed_abs, tag = 'smem constant byte address 0x4 - core index']
  #allocation1 [shape = 'u32[72,128]{1,0:T(1,128)}', space=vmem, size = 0x9000, scoped, tag = 'internal scratch']
  %s0 = inlined_call_operand.vmem [shape: f32[9,512], index: 0, kind: input, shape index: {}]
  %s1 = inlined_call_operand.vmem [shape: bf16[64,9], index: 1, kind: input, shape index: {}]
  %s2 = inlined_call_operand.vmem [shape: f32[64,1], index: 2, kind: input, shape index: {}]
  %s3 = inlined_call_operand.vmem [shape: bf16[128,64], index: 3, kind: input, shape index: {}]
  %s4 = inlined_call_operand.vmem [shape: f32[128,1], index: 4, kind: input, shape index: {}]
  %s5 = inlined_call_operand.vmem [shape: bf16[64,128], index: 5, kind: input, shape index: {}]
  %s6 = inlined_call_operand.vmem [shape: f32[64,1], index: 6, kind: input, shape index: {}]
  %s7 = inlined_call_operand.vmem [shape: bf16[2,64], index: 7, kind: input, shape index: {}]
  %s8 = inlined_call_operand.vmem [shape: f32[2,1], index: 8, kind: input, shape index: {}]
  %s9 = inlined_call_operand.vmem [shape: f32[2,512], index: 9, kind: output, shape index: {}]
  %s10 = sld [smem:[#allocation0]]
  $region92: #{position_net_forward.1} parent=0
    _
  %s12 = ssub.s32 1, %s10
  %s13 = scalar_select 0, %s12, %s10
  $region1: #{position_net_forward.1} parent=0
    #allocation2 [shape = 'u8[32768]{0}', space=vmem, size = 0x8000, scoped, tag = 'input window, operand 0']
    loop: start=0, step=1, limit=4
    $region2: #{position_net_forward.1} parent=1 // loop_pre_header
      _
    $region3: #{position_net_forward.1} parent=1 // loop_header
      %s15 = sphi 0, %s19
      %p16 = scmp.ge.s32.totalorder %s15, 4
      %s25 = sphi 0, %s27
      %s28 = sphi 0, %s25
      %s29 = sphi 0, %s28
      %s45 = sphi 0, %s29
      %s49 = sphi 0, %s49
      %s51 = sphi 0, %s49
      %s52 = sphi 0, %s51
      %s66 = sphi 0, %s52
      %s70 = sphi 0, %s70
      %s72 = sphi 0, %s70
      %s73 = sphi 0, %s72
      %s87 = sphi 0, %s73
      %s91 = sphi 0, %s91
      %s93 = sphi 0, %s91
      %s94 = sphi 0, %s93
      %s108 = sphi 0, %s94
      %s112 = sphi 0, %s112
      %s114 = sphi 0, %s112
      %s115 = sphi 0, %s114
      %s129 = sphi 0, %s115
      %s133 = sphi 0, %s133
      %s135 = sphi 0, %s133
      %s136 = sphi 0, %s135
      %s150 = sphi 0, %s136
      %s154 = sphi 0, %s154
      %s156 = sphi 0, %s154
      %s157 = sphi 0, %s156
      %s171 = sphi 0, %s157
      %s175 = sphi 0, %s175
      %s177 = sphi 0, %s175
      %s178 = sphi 0, %s177
      %s192 = sphi 0, %s178
      %s196 = sphi 0, %s196
      %s198 = sphi 0, %s196
      %s199 = sphi 0, %s198
      %s213 = sphi 0, %s199
      %s219 = sphi 0, %s221
      %s222 = sphi 0, %s219
      %s223 = sphi 0, %s222
      %s239 = sphi 0, %s223
    $region4: #{position_net_forward.1} parent=1 // loop_header_branch
      %18 = sbr.rel (%p16) target = $region8
    $region5: #{position_net_forward.1} parent=1 // loop_body
      %s20 = ssub.s32 %s15, 1
      %s21 = ssub.s32 %s15, 2
      %s22 = sadd.s32 %s15, 1
      %s23 = ssub.s32 %s15, %s22
      %p24 = scmp.eq.s32.totalorder %s23, 0
      %s26 = sadd.s32 %s25, 1
      %s27 = scalar_select %p24, %s25, %s26
      %p30 = pneg %p24
      %p31 = scmp.eq.s32.totalorder %s15, 1
      %p32 = por %p30, %p31
      %p33 = scmp.ne.s32.totalorder %s25, %s28
      %p34 = scmp.eq.s32.totalorder %s15, 0
      %p35 = por %p33, %p34
      %p36 = scmp.ne.s32.totalorder %s25, %s28
      %p37 = scmp.eq.s32.totalorder %s20, 1
      %p38 = por %p36, %p37
      %p39 = scmp.ne.s32.totalorder %s28, %s29
      %p40 = scmp.eq.s32.totalorder %s20, 0
      %p41 = por %p39, %p40
      %p42 = scmp.ne.s32.totalorder %s28, %s29
      %p43 = scmp.eq.s32.totalorder %s21, 1
      %p44 = por %p42, %p43
      %p46 = scmp.ne.s32.totalorder %s29, %s45
      %p47 = scmp.eq.s32.totalorder %s21, 0
      %p48 = por %p46, %p47
      %s50 = sadd.s32 %s49, 1
      %p53 = scmp.eq.s32.totalorder %s15, 1
      %p54 = scmp.ne.s32.totalorder %s49, %s51
      %p55 = scmp.eq.s32.totalorder %s15, 0
      %p56 = por %p54, %p55
      %p57 = scmp.ne.s32.totalorder %s49, %s51
      %p58 = scmp.eq.s32.totalorder %s20, 1
      %p59 = por %p57, %p58
      %p60 = scmp.ne.s32.totalorder %s51, %s52
      %p61 = scmp.eq.s32.totalorder %s20, 0
      %p62 = por %p60, %p61
      %p63 = scmp.ne.s32.totalorder %s51, %s52
      %p64 = scmp.eq.s32.totalorder %s21, 1
      %p65 = por %p63, %p64
      %p67 = scmp.ne.s32.totalorder %s52, %s66
      %p68 = scmp.eq.s32.totalorder %s21, 0
      %p69 = por %p67, %p68
      %s71 = sadd.s32 %s70, 1
      %p74 = scmp.eq.s32.totalorder %s15, 1
      %p75 = scmp.ne.s32.totalorder %s70, %s72
      %p76 = scmp.eq.s32.totalorder %s15, 0
      %p77 = por %p75, %p76
      %p78 = scmp.ne.s32.totalorder %s70, %s72
      %p79 = scmp.eq.s32.totalorder %s20, 1
      %p80 = por %p78, %p79
      %p81 = scmp.ne.s32.totalorder %s72, %s73
      %p82 = scmp.eq.s32.totalorder %s20, 0
      %p83 = por %p81, %p82
      %p84 = scmp.ne.s32.totalorder %s72, %s73
      %p85 = scmp.eq.s32.totalorder %s21, 1
      %p86 = por %p84, %p85
      %p88 = scmp.ne.s32.totalorder %s73, %s87
      %p89 = scmp.eq.s32.totalorder %s21, 0
      %p90 = por %p88, %p89
      %s92 = sadd.s32 %s91, 1
      %p95 = scmp.eq.s32.totalorder %s15, 1
      %p96 = scmp.ne.s32.totalorder %s91, %s93
      %p97 = scmp.eq.s32.totalorder %s15, 0
      %p98 = por %p96, %p97
      %p99 = scmp.ne.s32.totalorder %s91, %s93
      %p100 = scmp.eq.s32.totalorder %s20, 1
      %p101 = por %p99, %p100
      %p102 = scmp.ne.s32.totalorder %s93, %s94
      %p103 = scmp.eq.s32.totalorder %s20, 0
      %p104 = por %p102, %p103
      %p105 = scmp.ne.s32.totalorder %s93, %s94
      %p106 = scmp.eq.s32.totalorder %s21, 1
      %p107 = por %p105, %p106
      %p109 = scmp.ne.s32.totalorder %s94, %s108
      %p110 = scmp.eq.s32.totalorder %s21, 0
      %p111 = por %p109, %p110
      %s113 = sadd.s32 %s112, 1
      %p116 = scmp.eq.s32.totalorder %s15, 1
      %p117 = scmp.ne.s32.totalorder %s112, %s114
      %p118 = scmp.eq.s32.totalorder %s15, 0
      %p119 = por %p117, %p118
      %p120 = scmp.ne.s32.totalorder %s112, %s114
      %p121 = scmp.eq.s32.totalorder %s20, 1
      %p122 = por %p120, %p121
      %p123 = scmp.ne.s32.totalorder %s114, %s115
      %p124 = scmp.eq.s32.totalorder %s20, 0
      %p125 = por %p123, %p124
      %p126 = scmp.ne.s32.totalorder %s114, %s115
      %p127 = scmp.eq.s32.totalorder %s21, 1
      %p128 = por %p126, %p127
      %p130 = scmp.ne.s32.totalorder %s115, %s129
      %p131 = scmp.eq.s32.totalorder %s21, 0
      %p132 = por %p130, %p131
      %s134 = sadd.s32 %s133, 1
      %p137 = scmp.eq.s32.totalorder %s15, 1
      %p138 = scmp.ne.s32.totalorder %s133, %s135
      %p139 = scmp.eq.s32.totalorder %s15, 0
      %p140 = por %p138, %p139
      %p141 = scmp.ne.s32.totalorder %s133, %s135
      %p142 = scmp.eq.s32.totalorder %s20, 1
      %p143 = por %p141, %p142
      %p144 = scmp.ne.s32.totalorder %s135, %s136
      %p145 = scmp.eq.s32.totalorder %s20, 0
      %p146 = por %p144, %p145
      %p147 = scmp.ne.s32.totalorder %s135, %s136
      %p148 = scmp.eq.s32.totalorder %s21, 1
      %p149 = por %p147, %p148
      %p151 = scmp.ne.s32.totalorder %s136, %s150
      %p152 = scmp.eq.s32.totalorder %s21, 0
      %p153 = por %p151, %p152
      %s155 = sadd.s32 %s154, 1
      %p158 = scmp.eq.s32.totalorder %s15, 1
      %p159 = scmp.ne.s32.totalorder %s154, %s156
      %p160 = scmp.eq.s32.totalorder %s15, 0
      %p161 = por %p159, %p160
      %p162 = scmp.ne.s32.totalorder %s154, %s156
      %p163 = scmp.eq.s32.totalorder %s20, 1
      %p164 = por %p162, %p163
      %p165 = scmp.ne.s32.totalorder %s156, %s157
      %p166 = scmp.eq.s32.totalorder %s20, 0
      %p167 = por %p165, %p166
      %p168 = scmp.ne.s32.totalorder %s156, %s157
      %p169 = scmp.eq.s32.totalorder %s21, 1
      %p170 = por %p168, %p169
      %p172 = scmp.ne.s32.totalorder %s157, %s171
      %p173 = scmp.eq.s32.totalorder %s21, 0
      %p174 = por %p172, %p173
      %s176 = sadd.s32 %s175, 1
      %p179 = scmp.eq.s32.totalorder %s15, 1
      %p180 = scmp.ne.s32.totalorder %s175, %s177
      %p181 = scmp.eq.s32.totalorder %s15, 0
      %p182 = por %p180, %p181
      %p183 = scmp.ne.s32.totalorder %s175, %s177
      %p184 = scmp.eq.s32.totalorder %s20, 1
      %p185 = por %p183, %p184
      %p186 = scmp.ne.s32.totalorder %s177, %s178
      %p187 = scmp.eq.s32.totalorder %s20, 0
      %p188 = por %p186, %p187
      %p189 = scmp.ne.s32.totalorder %s177, %s178
      %p190 = scmp.eq.s32.totalorder %s21, 1
      %p191 = por %p189, %p190
      %p193 = scmp.ne.s32.totalorder %s178, %s192
      %p194 = scmp.eq.s32.totalorder %s21, 0
      %p195 = por %p193, %p194
      %s197 = sadd.s32 %s196, 1
      %p200 = scmp.eq.s32.totalorder %s15, 1
      %p201 = scmp.ne.s32.totalorder %s196, %s198
      %p202 = scmp.eq.s32.totalorder %s15, 0
      %p203 = por %p201, %p202
      %p204 = scmp.ne.s32.totalorder %s196, %s198
      %p205 = scmp.eq.s32.totalorder %s20, 1
      %p206 = por %p204, %p205
      %p207 = scmp.ne.s32.totalorder %s198, %s199
      %p208 = scmp.eq.s32.totalorder %s20, 0
      %p209 = por %p207, %p208
      %p210 = scmp.ne.s32.totalorder %s198, %s199
      %p211 = scmp.eq.s32.totalorder %s21, 1
      %p212 = por %p210, %p211
      %p214 = scmp.ne.s32.totalorder %s199, %s213
      %p215 = scmp.eq.s32.totalorder %s21, 0
      %p216 = por %p214, %p215
      %s217 = ssub.s32 %s15, %s22
      %p218 = scmp.eq.s32.totalorder %s217, 0
      %s220 = sadd.s32 %s219, 1
      %s221 = scalar_select %p218, %s219, %s220
      %p224 = pneg %p218
      %p225 = scmp.eq.s32.totalorder %s15, 1
      %p226 = por %p224, %p225
      %p227 = scmp.ne.s32.totalorder %s219, %s222
      %p228 = scmp.eq.s32.totalorder %s15, 0
      %p229 = por %p227, %p228
      %p230 = scmp.ne.s32.totalorder %s219, %s222
      %p231 = scmp.eq.s32.totalorder %s20, 1
      %p232 = por %p230, %p231
      %p233 = scmp.ne.s32.totalorder %s222, %s223
      %p234 = scmp.eq.s32.totalorder %s20, 0
      %p235 = por %p233, %p234
      %p236 = scmp.ne.s32.totalorder %s222, %s223
      %p237 = scmp.eq.s32.totalorder %s21, 1
      %p238 = por %p236, %p237
      %p240 = scmp.ne.s32.totalorder %s223, %s239
      %p241 = scmp.eq.s32.totalorder %s21, 0
      %p242 = por %p240, %p241
      %p243 = scmp.le.s32.totalorder 1, %s15
      %p244 = scmp.lt.s32.totalorder %s15, 3
      %p245 = pnand %p243, %p244
      %p246 = pneg %p245
      // Predicated region
      $region9: #{position_net_forward.1} parent=5 // pred_check
        _
      $region10: #{position_net_forward.1} parent=5 // pred_check_branch
        %248 = sbr.rel (%p245) target = $region12
      $region11: #{position_net_forward.1} parent=5 // pred_region
        %s249 = ssub.s32 %s15, 1
        // Predicated region
        $region13: #{position_net_forward.1} parent=11 // pred_check
          %p250 = pneg %p62
        $region14: #{position_net_forward.1} parent=11 // pred_check_branch
          %252 = sbr.rel (%p250) target = $region16
        $region15: #{position_net_forward.1} parent=11 // pred_region
          _
        $region16: #{position_net_forward.1} parent=11 // pred_fallthru
          _
        // Predicated region
        $region17: #{position_net_forward.1} parent=11 // pred_check
          %p253 = pneg %p83
        $region18: #{position_net_forward.1} parent=11 // pred_check_branch
          %255 = sbr.rel (%p253) target = $region20
        $region19: #{position_net_forward.1} parent=11 // pred_region
          _
        $region20: #{position_net_forward.1} parent=11 // pred_fallthru
          _
        // Predicated region
        $region21: #{position_net_forward.1} parent=11 // pred_check
          %p256 = pneg %p104
        $region22: #{position_net_forward.1} parent=11 // pred_check_branch
          %258 = sbr.rel (%p256) target = $region24
        $region23: #{position_net_forward.1} parent=11 // pred_region
          _
        $region24: #{position_net_forward.1} parent=11 // pred_fallthru
          _
        // Predicated region
        $region25: #{position_net_forward.1} parent=11 // pred_check
          %p259 = pneg %p125
        $region26: #{position_net_forward.1} parent=11 // pred_check_branch
          %261 = sbr.rel (%p259) target = $region28
        $region27: #{position_net_forward.1} parent=11 // pred_region
          _
        $region28: #{position_net_forward.1} parent=11 // pred_fallthru
          _
        // Predicated region
        $region29: #{position_net_forward.1} parent=11 // pred_check
          %p262 = pneg %p146
        $region30: #{position_net_forward.1} parent=11 // pred_check_branch
          %264 = sbr.rel (%p262) target = $region32
        $region31: #{position_net_forward.1} parent=11 // pred_region
          _
        $region32: #{position_net_forward.1} parent=11 // pred_fallthru
          _
        // Predicated region
        $region33: #{position_net_forward.1} parent=11 // pred_check
          %p265 = pneg %p167
        $region34: #{position_net_forward.1} parent=11 // pred_check_branch
          %267 = sbr.rel (%p265) target = $region36
        $region35: #{position_net_forward.1} parent=11 // pred_region
          _
        $region36: #{position_net_forward.1} parent=11 // pred_fallthru
          _
        // Predicated region
        $region37: #{position_net_forward.1} parent=11 // pred_check
          %p268 = pneg %p188
        $region38: #{position_net_forward.1} parent=11 // pred_check_branch
          %270 = sbr.rel (%p268) target = $region40
        $region39: #{position_net_forward.1} parent=11 // pred_region
          _
        $region40: #{position_net_forward.1} parent=11 // pred_fallthru
          _
        // Predicated region
        $region41: #{position_net_forward.1} parent=11 // pred_check
          %p271 = pneg %p209
        $region42: #{position_net_forward.1} parent=11 // pred_check_branch
          %273 = sbr.rel (%p271) target = $region44
        $region43: #{position_net_forward.1} parent=11 // pred_region
          _
        $region44: #{position_net_forward.1} parent=11 // pred_fallthru
          _
      $region12: #{position_net_forward.1} parent=5 // pred_fallthru
        _
      %p274 = scmp.lt.s32.totalorder %s15, 2
      // Predicated region
      $region45: #{position_net_forward.1} parent=5 // pred_check
        %p275 = pneg %p274
      $region46: #{position_net_forward.1} parent=5 // pred_check_branch
        %277 = sbr.rel (%p275) target = $region48
      $region47: #{position_net_forward.1} parent=5 // pred_region
        // Predicated region
        $region49: #{position_net_forward.1} parent=47 // pred_check
          %p278 = pneg %p35
        $region50: #{position_net_forward.1} parent=47 // pred_check_branch
          %280 = sbr.rel (%p278) target = $region52
        $region51: #{position_net_forward.1} parent=47 // pred_region
          %s281 = sand.u32 %s25, 1
          %s282 = sand.u32 %s25, 1
          %s283 = smul.addr %s282, 32
          %s284 = scalar_lea.vmem [#allocation2], %s283
          %s285 = smul.u32 2, %s15
          %s286 = smul.addr %s285, 8
          %s287 = scalar_lea.vmem %s0, %s286
          // Predicated region
          $region53: #{position_net_forward.1} parent=51 // pred_check
            _
          $region54: #{position_net_forward.1} parent=51 // pred_check_branch
            %289 = sbr.rel (0) target = $region56
          $region55: #{position_net_forward.1} parent=51 // pred_region
            // Predicated region
            $region57: #{position_net_forward.1} parent=55 // pred_check
              _
            $region58: #{position_net_forward.1} parent=55 // pred_check_branch
              %291 = sbr.rel (0) target = $region60
            $region59: #{position_net_forward.1} parent=55 // pred_region
              loop: start=0, step=1, limit=1
              $region61: #{position_net_forward.1} parent=59 // loop_pre_header
                _
              $region62: #{position_net_forward.1} parent=59 // loop_header
                %s293 = sphi 0, %s297
                %p294 = scmp.ge.s32.totalorder %s293, 1
                %s298 = sphi %s287, %s287
                %s299 = sphi %s284, %s284
              $region63: #{position_net_forward.1} parent=59 // loop_header_branch
                %296 = sbr.rel (%p294) target = $region67
              $region64: #{position_net_forward.1} parent=59 // loop_body
                %v300 = vld [vmem:[%s298] sm:$0xff]
                %301 = vst [vmem:[%s299] sm:$0xff] %v300
                %v302 = vld [vmem:[%s298 + $0x8] sm:$0xff]
                %303 = vst [vmem:[%s299 + $0x8] sm:$0xff] %v302
                %v304 = vld [vmem:[%s298 + $0x20] sm:$0xff]
                %305 = vst [vmem:[%s299 + $0x10] sm:$0xff] %v304
                %v306 = vld [vmem:[%s298 + $0x28] sm:$0xff]
                %307 = vst [vmem:[%s299 + $0x18] sm:$0xff] %v306
              $region65: #{position_net_forward.1} parent=59 // loop_footer
                %s297 = sadd.s32 1, %s293
              $region66: #{position_net_forward.1} parent=59 // loop_footer_branch
                %292 = sbr.rel target = $region62
              $region67: #{position_net_forward.1} parent=59 // loop_exit
                _
            $region60: #{position_net_forward.1} parent=55 // pred_fallthru
              _
            // Predicated region
            $region68: #{position_net_forward.1} parent=55 // pred_check
              _
            $region69: #{position_net_forward.1} parent=55 // pred_check_branch
              %309 = sbr.rel target = $region71
            $region70: #{position_net_forward.1} parent=55 // pred_region
              _
            $region71: #{position_net_forward.1} parent=55 // pred_fallthru
              _
          $region56: #{position_net_forward.1} parent=51 // pred_fallthru
            _
          %310 = vnop
        $region52: #{position_net_forward.1} parent=47 // pred_fallthru
          _
      $region48: #{position_net_forward.1} parent=5 // pred_fallthru
        _
      %p311 = scmp.le.s32.totalorder 1, %s15
      %p312 = scmp.lt.s32.totalorder %s15, 3
      %p313 = pnand %p311, %p312
      %p314 = pneg %p313
      // Predicated region
      $region72: #{position_net_forward.1} parent=5 // pred_check
        _
      $region73: #{position_net_forward.1} parent=5 // pred_check_branch
        %316 = sbr.rel (%p313) target = $region75
      $region74: #{position_net_forward.1} parent=5 // pred_region
        %s317 = ssub.s32 %s15, 1
        %s318 = sand.u32 %s28, 1
        %s319 = sand.u32 %s28, 1
        %s320 = smul.addr %s319, 32
        %s321 = scalar_lea.vmem [#allocation2], %s320
        // Predicated region
        $region76: #{position_net_forward.1} parent=74 // pred_check
          %p322 = pneg %p41
        $region77: #{position_net_forward.1} parent=74 // pred_check_branch
          %324 = sbr.rel (%p322) target = $region79
        $region78: #{position_net_forward.1} parent=74 // pred_region
          _
        $region79: #{position_net_forward.1} parent=74 // pred_fallthru
          _
        %s325 = sand.u32 %s28, 1
        %s326 = sand.u32 %s28, 1
        %s327 = smul.addr %s326, 32
        %s328 = scalar_lea.vmem [#allocation2], %s327
        %p329 = pneg %p41
        %p330 = pneg %p38
        %p331 = pneg %p62
        %p332 = pneg %p59
        %p333 = pneg %p83
        %p334 = pneg %p80
        %p335 = pneg %p104
        %p336 = pneg %p101
        %p337 = pneg %p125
        %p338 = pneg %p122
        %p339 = pneg %p146
        %p340 = pneg %p143
        %p341 = pneg %p167
        %p342 = pneg %p164
        %p343 = pneg %p188
        %p344 = pneg %p185
        %p345 = pneg %p209
        %p346 = pneg %p206
        %p347 = pneg %p235
        %p348 = pneg %p232
        %s349 = smul.u32 2, %s20
        %p350 = scmp.lt.s32.totalorder %s349, 3
        %s351 = scalar_select %p350, %s349, 3
        %s352 = smul.addr %s351, 2
        %s353 = scalar_lea.vmem %s9, %s352
        %s354 = smul.u32 2, %s20
        %s355 = smul.u32 2, %s20
        %p356 = scmp.lt.s32.totalorder %s355, 3
        %s357 = scalar_select %p356, %s355, 3
        %s358 = smul.addr %s357, 2
        %s359 = scalar_lea.vmem %s9, %s358
        %s360 = smul.u32 2, %s20
        %v362 = vld [vmem:[%s321] sm:$0xff]
        %v363 = vld [vmem:[%s321 + $0x8] sm:$0xff]
        %v364 = vld [vmem:[%s321 + $0x10] sm:$0x1]
        %v365 = vld [vmem:[%s321 + $0x18] sm:$0x1]
        %v366 = vpack.c.bf16 %v364, %v362
        %v367 = vpack.c.bf16 %v365, %v363
        %v368 = vld [vmem:[%s1] sm:$0xf]
        %v369 = vld [vmem:[%s1 + $0x4] sm:$0xf]
        %v370 = vld [vmem:[%s1 + $0x8] sm:$0xf]
        %v371 = vld [vmem:[%s1 + $0xc] sm:$0xf]
        %v372 = vld [vmem:[%s1 + $0x10] sm:$0xf]
        %v373 = vld [vmem:[%s1 + $0x14] sm:$0xf]
        %v374 = vld [vmem:[%s1 + $0x18] sm:$0xf]
        %v375 = vld [vmem:[%s1 + $0x1c] sm:$0xf]
        %v376 = vld [vmem:[%s2] sm:$0xff]
        %v377 = vld [vmem:[%s2 + $0x8] sm:$0xff]
        %v378 = vld [vmem:[%s2 + $0x10] sm:$0xff]
        %v379 = vld [vmem:[%s2 + $0x18] sm:$0xff]
        %v380 = vld [vmem:[%s2 + $0x20] sm:$0xff]
        %v381 = vld [vmem:[%s2 + $0x28] sm:$0xff]
        %v382 = vld [vmem:[%s2 + $0x30] sm:$0xff]
        %v383 = vld [vmem:[%s2 + $0x38] sm:$0xff]
        %385 = vset.pattern.permute.xlu0 0
        %386 = vperm.xlu0 %385, %v376
        %v387 = vpop.permute.xlu0 %386
        %390 = vset.pattern.permute.xlu0 0
        %391 = vperm.xlu0 %390, %v377
        %v392 = vpop.permute.xlu0 %391
        %395 = vset.pattern.permute.xlu0 0
        %396 = vperm.xlu0 %395, %v378
        %v397 = vpop.permute.xlu0 %396
        %400 = vset.pattern.permute.xlu0 0
        %401 = vperm.xlu0 %400, %v379
        %v402 = vpop.permute.xlu0 %401
        %405 = vset.pattern.permute.xlu0 0
        %406 = vperm.xlu0 %405, %v380
        %v407 = vpop.permute.xlu0 %406
        %410 = vset.pattern.permute.xlu0 0
        %411 = vperm.xlu0 %410, %v381
        %v412 = vpop.permute.xlu0 %411
        %415 = vset.pattern.permute.xlu0 0
        %416 = vperm.xlu0 %415, %v382
        %v417 = vpop.permute.xlu0 %416
        %420 = vset.pattern.permute.xlu0 0
        %421 = vperm.xlu0 %420, %v383
        %v422 = vpop.permute.xlu0 %421
        %v432 = vunpack.c.l.b16 %v368
        %v433 = vunpack.c.l.b16 %v369
        %v434 = vunpack.c.l.b16 %v370
        %v435 = vunpack.c.l.b16 %v371
        %v436 = vunpack.c.l.b16 %v372
        %v437 = vunpack.c.l.b16 %v373
        %v438 = vunpack.c.l.b16 %v374
        %v439 = vunpack.c.l.b16 %v375
        %v440 = vpack.c.b16 %v433, %v432
        %v441 = vpack.c.b16 %v435, %v434
        %v442 = vpack.c.b16 %v437, %v436
        %v443 = vpack.c.b16 %v439, %v438
        %vm444 = vcmask 72704
        %v446 = vsel %vm444, %v440, 0
        %v449 = vsel %vm444, %v441, 0
        %v452 = vsel %vm444, %v442, 0
        %v455 = vsel %vm444, %v443, 0
        %vm457 = vcmask 1043456
        %vm458 = vcmask 1044480
        %v459 = vsel %vm457, 4294967295, 65535
        %v460 = vsel %vm458, %v459, 0
        %v462 = vand.u32 %v366, %v460
        %v465 = vand.u32 %v367, %v460
        %467 = vmatpush.bf16.msra.mxu0 0
        %468 = vmatpush.bf16.msra.mxu0 0
        %469 = vmatpush.bf16.msra.mxu0 0
        %470 = vmatpush.bf16.msra.mxu0 0
        %471 = vmatpush.bf16.msra.mxu0 0
        %472 = vmatpush.bf16.msra.mxu0 0
        %473 = vmatpush.bf16.msra.mxu0 0
        %474 = vmatpush.bf16.msra.mxu0 %v462
        %475 = vmatmul.bf16.gmra.mxu0 %v446
        %v476 = vpop.f32.mrf.mxu0
        %v477 = vadd.f32 %v387, %v476
        %v478 = vpop.f32.mrf.mxu0
        %v479 = vadd.f32 %v392, %v478
        %480 = vmatmul.bf16.gmra.mxu0 %v449
        %v481 = vpop.f32.mrf.mxu0
        %v482 = vadd.f32 %v397, %v481
        %v483 = vpop.f32.mrf.mxu0
        %v484 = vadd.f32 %v402, %v483
        %485 = vmatmul.bf16.gmra.mxu0 %v452
        %v486 = vpop.f32.mrf.mxu0
        %v487 = vadd.f32 %v407, %v486
        %v488 = vpop.f32.mrf.mxu0
        %v489 = vadd.f32 %v412, %v488
        %490 = vmatmul.bf16.gmra.mxu0 %v455
        %v491 = vpop.f32.mrf.mxu0
        %v492 = vadd.f32 %v417, %v491
        %v493 = vpop.f32.mrf.mxu0
        %v494 = vadd.f32 %v422, %v493
        %495 = vdwg.mxu0
        %496 = vmatpush.bf16.msra.mxu0 0
        %497 = vmatpush.bf16.msra.mxu0 0
        %498 = vmatpush.bf16.msra.mxu0 0
        %499 = vmatpush.bf16.msra.mxu0 0
        %500 = vmatpush.bf16.msra.mxu0 0
        %501 = vmatpush.bf16.msra.mxu0 0
        %502 = vmatpush.bf16.msra.mxu0 0
        %503 = vmatpush.bf16.msra.mxu0 %v465
        %504 = vmatmul.bf16.gmra.mxu0 %v446
        %v505 = vpop.f32.mrf.mxu0
        %v506 = vadd.f32 %v387, %v505
        %v507 = vpop.f32.mrf.mxu0
        %v508 = vadd.f32 %v392, %v507
        %509 = vmatmul.bf16.gmra.mxu0 %v449
        %v510 = vpop.f32.mrf.mxu0
        %v511 = vadd.f32 %v397, %v510
        %v512 = vpop.f32.mrf.mxu0
        %v513 = vadd.f32 %v402, %v512
        %514 = vmatmul.bf16.gmra.mxu0 %v452
        %v515 = vpop.f32.mrf.mxu0
        %v516 = vadd.f32 %v407, %v515
        %v517 = vpop.f32.mrf.mxu0
        %v518 = vadd.f32 %v412, %v517
        %519 = vmatmul.bf16.gmra.mxu0 %v455
        %v520 = vpop.f32.mrf.mxu0
        %v521 = vadd.f32 %v417, %v520
        %v522 = vpop.f32.mrf.mxu0
        %v523 = vadd.f32 %v422, %v522
        %524 = vdwg.mxu0
        %v525 = vmax.f32 %v477, 0.0
        %v526 = vmax.f32 %v506, 0.0
        %v527 = vmax.f32 %v479, 0.0
        %v528 = vmax.f32 %v508, 0.0
        %v529 = vmax.f32 %v482, 0.0
        %v530 = vmax.f32 %v511, 0.0
        %v531 = vmax.f32 %v484, 0.0
        %v532 = vmax.f32 %v513, 0.0
        %v533 = vmax.f32 %v487, 0.0
        %v534 = vmax.f32 %v516, 0.0
        %v535 = vmax.f32 %v489, 0.0
        %v536 = vmax.f32 %v518, 0.0
        %v537 = vmax.f32 %v492, 0.0
        %v538 = vmax.f32 %v521, 0.0
        %v539 = vmax.f32 %v494, 0.0
        %v540 = vmax.f32 %v523, 0.0
        %v541 = vpack.c.bf16 %v527, %v525
        %v542 = vpack.c.bf16 %v528, %v526
        %v543 = vpack.c.bf16 %v531, %v529
        %v544 = vpack.c.bf16 %v532, %v530
        %v545 = vpack.c.bf16 %v535, %v533
        %v546 = vpack.c.bf16 %v536, %v534
        %v547 = vpack.c.bf16 %v539, %v537
        %v548 = vpack.c.bf16 %v540, %v538
        %v549 = vld [vmem:[%s3] sm:$0xf]
        %v550 = vld [vmem:[%s3 + $0x4] sm:$0xf]
        %v551 = vld [vmem:[%s3 + $0x8] sm:$0xf]
        %v552 = vld [vmem:[%s3 + $0xc] sm:$0xf]
        %v553 = vld [vmem:[%s3 + $0x10] sm:$0xf]
        %v554 = vld [vmem:[%s3 + $0x14] sm:$0xf]
        %v555 = vld [vmem:[%s3 + $0x18] sm:$0xf]
        %v556 = vld [vmem:[%s3 + $0x1c] sm:$0xf]
        %v557 = vld [vmem:[%s3 + $0x20] sm:$0xf]
        %v558 = vld [vmem:[%s3 + $0x24] sm:$0xf]
        %v559 = vld [vmem:[%s3 + $0x28] sm:$0xf]
        %v560 = vld [vmem:[%s3 + $0x2c] sm:$0xf]
        %v561 = vld [vmem:[%s3 + $0x30] sm:$0xf]
        %v562 = vld [vmem:[%s3 + $0x34] sm:$0xf]
        %v563 = vld [vmem:[%s3 + $0x38] sm:$0xf]
        %v564 = vld [vmem:[%s3 + $0x3c] sm:$0xf]
        %v565 = vld [vmem:[%s4] sm:$0xff]
        %v566 = vld [vmem:[%s4 + $0x8] sm:$0xff]
        %v567 = vld [vmem:[%s4 + $0x10] sm:$0xff]
        %v568 = vld [vmem:[%s4 + $0x18] sm:$0xff]
        %v569 = vld [vmem:[%s4 + $0x20] sm:$0xff]
        %v570 = vld [vmem:[%s4 + $0x28] sm:$0xff]
        %v571 = vld [vmem:[%s4 + $0x30] sm:$0xff]
        %v572 = vld [vmem:[%s4 + $0x38] sm:$0xff]
        %v573 = vld [vmem:[%s4 + $0x40] sm:$0xff]
        %v574 = vld [vmem:[%s4 + $0x48] sm:$0xff]
        %v575 = vld [vmem:[%s4 + $0x50] sm:$0xff]
        %v576 = vld [vmem:[%s4 + $0x58] sm:$0xff]
        %v577 = vld [vmem:[%s4 + $0x60] sm:$0xff]
        %v578 = vld [vmem:[%s4 + $0x68] sm:$0xff]
        %v579 = vld [vmem:[%s4 + $0x70] sm:$0xff]
        %v580 = vld [vmem:[%s4 + $0x78] sm:$0xff]
        %582 = vset.pattern.permute.xlu0 0
        %583 = vperm.xlu0 %582, %v565
        %v584 = vpop.permute.xlu0 %583
        %587 = vset.pattern.permute.xlu0 0
        %588 = vperm.xlu0 %587, %v566
        %v589 = vpop.permute.xlu0 %588
        %592 = vset.pattern.permute.xlu0 0
        %593 = vperm.xlu0 %592, %v567
        %v594 = vpop.permute.xlu0 %593
        %597 = vset.pattern.permute.xlu0 0
        %598 = vperm.xlu0 %597, %v568
        %v599 = vpop.permute.xlu0 %598
        %602 = vset.pattern.permute.xlu0 0
        %603 = vperm.xlu0 %602, %v569
        %v604 = vpop.permute.xlu0 %603
        %607 = vset.pattern.permute.xlu0 0
        %608 = vperm.xlu0 %607, %v570
        %v609 = vpop.permute.xlu0 %608
        %612 = vset.pattern.permute.xlu0 0
        %613 = vperm.xlu0 %612, %v571
        %v614 = vpop.permute.xlu0 %613
        %617 = vset.pattern.permute.xlu0 0
        %618 = vperm.xlu0 %617, %v572
        %v619 = vpop.permute.xlu0 %618
        %622 = vset.pattern.permute.xlu0 0
        %623 = vperm.xlu0 %622, %v573
        %v624 = vpop.permute.xlu0 %623
        %627 = vset.pattern.permute.xlu0 0
        %628 = vperm.xlu0 %627, %v574
        %v629 = vpop.permute.xlu0 %628
        %632 = vset.pattern.permute.xlu0 0
        %633 = vperm.xlu0 %632, %v575
        %v634 = vpop.permute.xlu0 %633
        %637 = vset.pattern.permute.xlu0 0
        %638 = vperm.xlu0 %637, %v576
        %v639 = vpop.permute.xlu0 %638
        %642 = vset.pattern.permute.xlu0 0
        %643 = vperm.xlu0 %642, %v577
        %v644 = vpop.permute.xlu0 %643
        %647 = vset.pattern.permute.xlu0 0
        %648 = vperm.xlu0 %647, %v578
        %v649 = vpop.permute.xlu0 %648
        %652 = vset.pattern.permute.xlu0 0
        %653 = vperm.xlu0 %652, %v579
        %v654 = vpop.permute.xlu0 %653
        %657 = vset.pattern.permute.xlu0 0
        %658 = vperm.xlu0 %657, %v580
        %v659 = vpop.permute.xlu0 %658
        %v677 = vunpack.c.l.b16 %v549
        %v678 = vunpack.c.l.b16 %v550
        %v679 = vunpack.c.l.b16 %v551
        %v680 = vunpack.c.l.b16 %v552
        %v681 = vunpack.c.l.b16 %v553
        %v682 = vunpack.c.l.b16 %v554
        %v683 = vunpack.c.l.b16 %v555
        %v684 = vunpack.c.l.b16 %v556
        %v685 = vunpack.c.l.b16 %v557
        %v686 = vunpack.c.l.b16 %v558
        %v687 = vunpack.c.l.b16 %v559
        %v688 = vunpack.c.l.b16 %v560
        %v689 = vunpack.c.l.b16 %v561
        %v690 = vunpack.c.l.b16 %v562
        %v691 = vunpack.c.l.b16 %v563
        %v692 = vunpack.c.l.b16 %v564
        %v693 = vpack.c.b16 %v678, %v677
        %v694 = vpack.c.b16 %v680, %v679
        %v695 = vpack.c.b16 %v682, %v681
        %v696 = vpack.c.b16 %v684, %v683
        %v697 = vpack.c.b16 %v686, %v685
        %v698 = vpack.c.b16 %v688, %v687
        %v699 = vpack.c.b16 %v690, %v689
        %v700 = vpack.c.b16 %v692, %v691
        %vm701 = vcmask 523264
        %v703 = vsel %vm701, %v693, 0
        %v706 = vsel %vm701, %v694, 0
        %v709 = vsel %vm701, %v695, 0
        %v712 = vsel %vm701, %v696, 0
        %v715 = vsel %vm701, %v697, 0
        %v718 = vsel %vm701, %v698, 0
        %v721 = vsel %vm701, %v699, 0
        %v724 = vsel %vm701, %v700, 0
        %726 = vmatpush.bf16.msra.mxu0 0
        %727 = vmatpush.bf16.msra.mxu0 0
        %728 = vmatpush.bf16.msra.mxu0 0
        %729 = vmatpush.bf16.msra.mxu0 0
        %730 = vmatpush.bf16.msra.mxu0 %v547
        %731 = vmatpush.bf16.msra.mxu0 %v545
        %732 = vmatpush.bf16.msra.mxu0 %v543
        %733 = vmatpush.bf16.msra.mxu0 %v541
        %734 = vmatmul.bf16.gmra.mxu0 %v703
        %v735 = vpop.f32.mrf.mxu0
        %v736 = vadd.f32 %v584, %v735
        %v737 = vpop.f32.mrf.mxu0
        %v738 = vadd.f32 %v589, %v737
        %739 = vmatmul.bf16.gmra.mxu0 %v706
        %v740 = vpop.f32.mrf.mxu0
        %v741 = vadd.f32 %v594, %v740
        %v742 = vpop.f32.mrf.mxu0
        %v743 = vadd.f32 %v599, %v742
        %744 = vmatmul.bf16.gmra.mxu0 %v709
        %v745 = vpop.f32.mrf.mxu0
        %v746 = vadd.f32 %v604, %v745
        %v747 = vpop.f32.mrf.mxu0
        %v748 = vadd.f32 %v609, %v747
        %749 = vmatmul.bf16.gmra.mxu0 %v712
        %v750 = vpop.f32.mrf.mxu0
        %v751 = vadd.f32 %v614, %v750
        %v752 = vpop.f32.mrf.mxu0
        %v753 = vadd.f32 %v619, %v752
        %754 = vmatmul.bf16.gmra.mxu0 %v715
        %v755 = vpop.f32.mrf.mxu0
        %v756 = vadd.f32 %v624, %v755
        %v757 = vpop.f32.mrf.mxu0
        %v758 = vadd.f32 %v629, %v757
        %759 = vmatmul.bf16.gmra.mxu0 %v718
        %v760 = vpop.f32.mrf.mxu0
        %v761 = vadd.f32 %v634, %v760
        %v762 = vpop.f32.mrf.mxu0
        %v763 = vadd.f32 %v639, %v762
        %764 = vmatmul.bf16.gmra.mxu0 %v721
        %v765 = vpop.f32.mrf.mxu0
        %v766 = vadd.f32 %v644, %v765
        %v767 = vpop.f32.mrf.mxu0
        %v768 = vadd.f32 %v649, %v767
        %769 = vmatmul.bf16.gmra.mxu0 %v724
        %v770 = vpop.f32.mrf.mxu0
        %v771 = vadd.f32 %v654, %v770
        %v772 = vpop.f32.mrf.mxu0
        %v773 = vadd.f32 %v659, %v772
        %774 = vdwg.mxu0
        %775 = vmatpush.bf16.msra.mxu0 0
        %776 = vmatpush.bf16.msra.mxu0 0
        %777 = vmatpush.bf16.msra.mxu0 0
        %778 = vmatpush.bf16.msra.mxu0 0
        %779 = vmatpush.bf16.msra.mxu0 %v548
        %780 = vmatpush.bf16.msra.mxu0 %v546
        %781 = vmatpush.bf16.msra.mxu0 %v544
        %782 = vmatpush.bf16.msra.mxu0 %v542
        %783 = vmatmul.bf16.gmra.mxu0 %v703
        %v784 = vpop.f32.mrf.mxu0
        %v785 = vadd.f32 %v584, %v784
        %v786 = vpop.f32.mrf.mxu0
        %v787 = vadd.f32 %v589, %v786
        %788 = vmatmul.bf16.gmra.mxu0 %v706
        %v789 = vpop.f32.mrf.mxu0
        %v790 = vadd.f32 %v594, %v789
        %v791 = vpop.f32.mrf.mxu0
        %v792 = vadd.f32 %v599, %v791
        %793 = vmatmul.bf16.gmra.mxu0 %v709
        %v794 = vpop.f32.mrf.mxu0
        %v795 = vadd.f32 %v604, %v794
        %v796 = vpop.f32.mrf.mxu0
        %v797 = vadd.f32 %v609, %v796
        %798 = vmatmul.bf16.gmra.mxu0 %v712
        %v799 = vpop.f32.mrf.mxu0
        %v800 = vadd.f32 %v614, %v799
        %v801 = vpop.f32.mrf.mxu0
        %v802 = vadd.f32 %v619, %v801
        %803 = vmatmul.bf16.gmra.mxu0 %v715
        %v804 = vpop.f32.mrf.mxu0
        %v805 = vadd.f32 %v624, %v804
        %v806 = vpop.f32.mrf.mxu0
        %v807 = vadd.f32 %v629, %v806
        %808 = vmatmul.bf16.gmra.mxu0 %v718
        %v809 = vpop.f32.mrf.mxu0
        %v810 = vadd.f32 %v634, %v809
        %v811 = vpop.f32.mrf.mxu0
        %v812 = vadd.f32 %v639, %v811
        %813 = vmatmul.bf16.gmra.mxu0 %v721
        %v814 = vpop.f32.mrf.mxu0
        %v815 = vadd.f32 %v644, %v814
        %v816 = vpop.f32.mrf.mxu0
        %v817 = vadd.f32 %v649, %v816
        %818 = vmatmul.bf16.gmra.mxu0 %v724
        %v819 = vpop.f32.mrf.mxu0
        %v820 = vadd.f32 %v654, %v819
        %v821 = vpop.f32.mrf.mxu0
        %v822 = vadd.f32 %v659, %v821
        %823 = vdwg.mxu0
        %v824 = vmax.f32 %v736, 0.0
        %v825 = vmax.f32 %v785, 0.0
        %v826 = vmax.f32 %v738, 0.0
        %v827 = vmax.f32 %v787, 0.0
        %v828 = vmax.f32 %v741, 0.0
        %v829 = vmax.f32 %v790, 0.0
        %v830 = vmax.f32 %v743, 0.0
        %v831 = vmax.f32 %v792, 0.0
        %v832 = vmax.f32 %v746, 0.0
        %v833 = vmax.f32 %v795, 0.0
        %v834 = vmax.f32 %v748, 0.0
        %v835 = vmax.f32 %v797, 0.0
        %v836 = vmax.f32 %v751, 0.0
        %v837 = vmax.f32 %v800, 0.0
        %v838 = vmax.f32 %v753, 0.0
        %v839 = vmax.f32 %v802, 0.0
        %v840 = vmax.f32 %v756, 0.0
        %v841 = vmax.f32 %v805, 0.0
        %v842 = vmax.f32 %v758, 0.0
        %v843 = vmax.f32 %v807, 0.0
        %v844 = vmax.f32 %v761, 0.0
        %v845 = vmax.f32 %v810, 0.0
        %v846 = vmax.f32 %v763, 0.0
        %v847 = vmax.f32 %v812, 0.0
        %v848 = vmax.f32 %v766, 0.0
        %v849 = vmax.f32 %v815, 0.0
        %v850 = vmax.f32 %v768, 0.0
        %v851 = vmax.f32 %v817, 0.0
        %v852 = vmax.f32 %v771, 0.0
        %v853 = vmax.f32 %v820, 0.0
        %v854 = vmax.f32 %v773, 0.0
        %v855 = vmax.f32 %v822, 0.0
        %v856 = vpack.c.bf16 %v826, %v824
        %v857 = vpack.c.bf16 %v827, %v825
        %v858 = vpack.c.bf16 %v830, %v828
        %v859 = vpack.c.bf16 %v831, %v829
        %v860 = vpack.c.bf16 %v834, %v832
        %v861 = vpack.c.bf16 %v835, %v833
        %v862 = vpack.c.bf16 %v838, %v836
        %v863 = vpack.c.bf16 %v839, %v837
        %v864 = vpack.c.bf16 %v842, %v840
        %v865 = vpack.c.bf16 %v843, %v841
        %v866 = vpack.c.bf16 %v846, %v844
        %v867 = vpack.c.bf16 %v847, %v845
        %v868 = vpack.c.bf16 %v850, %v848
        %v869 = vpack.c.bf16 %v851, %v849
        %v870 = vpack.c.bf16 %v854, %v852
        %v871 = vpack.c.bf16 %v855, %v853
        %v872 = vld [vmem:[%s5] sm:$0xf]
        %v873 = vld [vmem:[%s5 + $0x4] sm:$0xf]
        %v874 = vld [vmem:[%s5 + $0x8] sm:$0xf]
        %v875 = vld [vmem:[%s5 + $0xc] sm:$0xf]
        %v876 = vld [vmem:[%s5 + $0x10] sm:$0xf]
        %v877 = vld [vmem:[%s5 + $0x14] sm:$0xf]
        %v878 = vld [vmem:[%s5 + $0x18] sm:$0xf]
        %v879 = vld [vmem:[%s5 + $0x1c] sm:$0xf]
        %v880 = vld [vmem:[%s6] sm:$0xff]
        %v881 = vld [vmem:[%s6 + $0x8] sm:$0xff]
        %v882 = vld [vmem:[%s6 + $0x10] sm:$0xff]
        %v883 = vld [vmem:[%s6 + $0x18] sm:$0xff]
        %v884 = vld [vmem:[%s6 + $0x20] sm:$0xff]
        %v885 = vld [vmem:[%s6 + $0x28] sm:$0xff]
        %v886 = vld [vmem:[%s6 + $0x30] sm:$0xff]
        %v887 = vld [vmem:[%s6 + $0x38] sm:$0xff]
        %889 = vset.pattern.permute.xlu0 0
        %890 = vperm.xlu0 %889, %v880
        %v891 = vpop.permute.xlu0 %890
        %894 = vset.pattern.permute.xlu0 0
        %895 = vperm.xlu0 %894, %v881
        %v896 = vpop.permute.xlu0 %895
        %899 = vset.pattern.permute.xlu0 0
        %900 = vperm.xlu0 %899, %v882
        %v901 = vpop.permute.xlu0 %900
        %904 = vset.pattern.permute.xlu0 0
        %905 = vperm.xlu0 %904, %v883
        %v906 = vpop.permute.xlu0 %905
        %909 = vset.pattern.permute.xlu0 0
        %910 = vperm.xlu0 %909, %v884
        %v911 = vpop.permute.xlu0 %910
        %914 = vset.pattern.permute.xlu0 0
        %915 = vperm.xlu0 %914, %v885
        %v916 = vpop.permute.xlu0 %915
        %919 = vset.pattern.permute.xlu0 0
        %920 = vperm.xlu0 %919, %v886
        %v921 = vpop.permute.xlu0 %920
        %924 = vset.pattern.permute.xlu0 0
        %925 = vperm.xlu0 %924, %v887
        %v926 = vpop.permute.xlu0 %925
        %v936 = vunpack.c.l.b16 %v872
        %v937 = vunpack.c.l.b16 %v873
        %v938 = vunpack.c.l.b16 %v874
        %v939 = vunpack.c.l.b16 %v875
        %v940 = vunpack.c.l.b16 %v876
        %v941 = vunpack.c.l.b16 %v877
        %v942 = vunpack.c.l.b16 %v878
        %v943 = vunpack.c.l.b16 %v879
        %v944 = vpack.c.b16 %v937, %v936
        %v945 = vpack.c.b16 %v939, %v938
        %v946 = vpack.c.b16 %v941, %v940
        %v947 = vpack.c.b16 %v943, %v942
        %952 = vmatpush.bf16.msra.mxu0 %v870
        %953 = vmatpush.bf16.msra.mxu0 %v868
        %954 = vmatpush.bf16.msra.mxu0 %v866
        %955 = vmatpush.bf16.msra.mxu0 %v864
        %956 = vmatpush.bf16.msra.mxu0 %v862
        %957 = vmatpush.bf16.msra.mxu0 %v860
        %958 = vmatpush.bf16.msra.mxu0 %v858
        %959 = vmatpush.bf16.msra.mxu0 %v856
        %960 = vmatmul.bf16.gmra.mxu0 %v944
        %v961 = vpop.f32.mrf.mxu0
        %v962 = vadd.f32 %v891, %v961
        %v963 = vpop.f32.mrf.mxu0
        %v964 = vadd.f32 %v896, %v963
        %965 = vmatmul.bf16.gmra.mxu0 %v945
        %v966 = vpop.f32.mrf.mxu0
        %v967 = vadd.f32 %v901, %v966
        %v968 = vpop.f32.mrf.mxu0
        %v969 = vadd.f32 %v906, %v968
        %970 = vmatmul.bf16.gmra.mxu0 %v946
        %v971 = vpop.f32.mrf.mxu0
        %v972 = vadd.f32 %v911, %v971
        %v973 = vpop.f32.mrf.mxu0
        %v974 = vadd.f32 %v916, %v973
        %975 = vmatmul.bf16.gmra.mxu0 %v947
        %v976 = vpop.f32.mrf.mxu0
        %v977 = vadd.f32 %v921, %v976
        %v978 = vpop.f32.mrf.mxu0
        %v979 = vadd.f32 %v926, %v978
        %980 = vdwg.mxu0
        %981 = vmatpush.bf16.msra.mxu0 %v871
        %982 = vmatpush.bf16.msra.mxu0 %v869
        %983 = vmatpush.bf16.msra.mxu0 %v867
        %984 = vmatpush.bf16.msra.mxu0 %v865
        %985 = vmatpush.bf16.msra.mxu0 %v863
        %986 = vmatpush.bf16.msra.mxu0 %v861
        %987 = vmatpush.bf16.msra.mxu0 %v859
        %988 = vmatpush.bf16.msra.mxu0 %v857
        %989 = vmatmul.bf16.gmra.mxu0 %v944
        %v990 = vpop.f32.mrf.mxu0
        %v991 = vadd.f32 %v891, %v990
        %v992 = vpop.f32.mrf.mxu0
        %v993 = vadd.f32 %v896, %v992
        %994 = vmatmul.bf16.gmra.mxu0 %v945
        %v995 = vpop.f32.mrf.mxu0
        %v996 = vadd.f32 %v901, %v995
        %v997 = vpop.f32.mrf.mxu0
        %v998 = vadd.f32 %v906, %v997
        %999 = vmatmul.bf16.gmra.mxu0 %v946
        %v1000 = vpop.f32.mrf.mxu0
        %v1001 = vadd.f32 %v911, %v1000
        %v1002 = vpop.f32.mrf.mxu0
        %v1003 = vadd.f32 %v916, %v1002
        %1004 = vmatmul.bf16.gmra.mxu0 %v947
        %v1005 = vpop.f32.mrf.mxu0
        %v1006 = vadd.f32 %v921, %v1005
        %v1007 = vpop.f32.mrf.mxu0
        %v1008 = vadd.f32 %v926, %v1007
        %1009 = vdwg.mxu0
        %v1010 = vmax.f32 %v962, 0.0
        %v1011 = vmax.f32 %v991, 0.0
        %v1012 = vmax.f32 %v964, 0.0
        %v1013 = vmax.f32 %v993, 0.0
        %v1014 = vmax.f32 %v967, 0.0
        %v1015 = vmax.f32 %v996, 0.0
        %v1016 = vmax.f32 %v969, 0.0
        %v1017 = vmax.f32 %v998, 0.0
        %v1018 = vmax.f32 %v972, 0.0
        %v1019 = vmax.f32 %v1001, 0.0
        %v1020 = vmax.f32 %v974, 0.0
        %v1021 = vmax.f32 %v1003, 0.0
        %v1022 = vmax.f32 %v977, 0.0
        %v1023 = vmax.f32 %v1006, 0.0
        %v1024 = vmax.f32 %v979, 0.0
        %v1025 = vmax.f32 %v1008, 0.0
        %v1026 = vpack.c.bf16 %v1012, %v1010
        %v1027 = vpack.c.bf16 %v1013, %v1011
        %v1028 = vpack.c.bf16 %v1016, %v1014
        %v1029 = vpack.c.bf16 %v1017, %v1015
        %v1030 = vpack.c.bf16 %v1020, %v1018
        %v1031 = vpack.c.bf16 %v1021, %v1019
        %v1032 = vpack.c.bf16 %v1024, %v1022
        %v1033 = vpack.c.bf16 %v1025, %v1023
        %v1034 = vld [vmem:[%s7] sm:$0x1]
        %v1035 = vld [vmem:[%s8] sm:$0x3]
        %1037 = vset.pattern.permute.xlu0 0
        %1038 = vperm.xlu0 %1037, %v1035
        %v1039 = vpop.permute.xlu0 %1038
        %v1042 = vsel %vm701, %v1034, 0
        %1044 = vmatpush.bf16.msra.mxu0 0
        %1045 = vmatpush.bf16.msra.mxu0 0
        %1046 = vmatpush.bf16.msra.mxu0 0
        %1047 = vmatpush.bf16.msra.mxu0 0
        %1048 = vmatpush.bf16.msra.mxu0 %v1032
        %1049 = vmatpush.bf16.msra.mxu0 %v1030
        %1050 = vmatpush.bf16.msra.mxu0 %v1028
        %1051 = vmatpush.bf16.msra.mxu0 %v1026
        %1052 = vmatmul.bf16.gmra.mxu0 %v1042
        %v1053 = vpop.f32.mrf.mxu0
        %v1054 = vadd.f32 %v1039, %v1053
        %v1055 = vpop.f32.mrf.mxu0
        %1056 = vdwg.mxu0
        %1057 = vmatpush.bf16.msra.mxu0 0
        %1058 = vmatpush.bf16.msra.mxu0 0
        %1059 = vmatpush.bf16.msra.mxu0 0
        %1060 = vmatpush.bf16.msra.mxu0 0
        %1061 = vmatpush.bf16.msra.mxu0 %v1033
        %1062 = vmatpush.bf16.msra.mxu0 %v1031
        %1063 = vmatpush.bf16.msra.mxu0 %v1029
        %1064 = vmatpush.bf16.msra.mxu0 %v1027
        %1065 = vmatmul.bf16.gmra.mxu0 %v1042
        %v1066 = vpop.f32.mrf.mxu0
        %v1067 = vadd.f32 %v1039, %v1066
        %v1068 = vpop.f32.mrf.mxu0
        %1069 = vdwg.mxu0
        %v1072 = vrot.slane %v1067, 6
        %vm1073 = vcmask 1041408
        %v1074 = vsel %vm1073, %v1054, %v1072
        %1076 = vst [vmem:[%s359] sm:$0xf] %v1074
        %s1077 = smul.u32 2, %s20
        %p1078 = scmp.lt.s32.totalorder %s1077, 3
        %s1079 = scalar_select %p1078, %s1077, 3
        %s1080 = smul.addr %s1079, 2
        %s1081 = scalar_lea.vmem %s9, %s1080
        // Predicated region
        $region80: #{position_net_forward.1} parent=74 // pred_check
          %p1082 = pneg %p232
        $region81: #{position_net_forward.1} parent=74 // pred_check_branch
          %1084 = sbr.rel (%p1082) target = $region83
        $region82: #{position_net_forward.1} parent=74 // pred_region
          %s1085 = smul.u32 2, %s20
        $region83: #{position_net_forward.1} parent=74 // pred_fallthru
          _
      $region75: #{position_net_forward.1} parent=5 // pred_fallthru
        _
      %p1086 = scmp.le.s32.totalorder 2, %s15
      // Predicated region
      $region84: #{position_net_forward.1} parent=5 // pred_check
        %p1087 = pneg %p1086
      $region85: #{position_net_forward.1} parent=5 // pred_check_branch
        %1089 = sbr.rel (%p1087) target = $region87
      $region86: #{position_net_forward.1} parent=5 // pred_region
        %s1090 = ssub.s32 %s15, 2
        // Predicated region
        $region88: #{position_net_forward.1} parent=86 // pred_check
          %p1091 = pneg %p238
        $region89: #{position_net_forward.1} parent=86 // pred_check_branch
          %1093 = sbr.rel (%p1091) target = $region91
        $region90: #{position_net_forward.1} parent=86 // pred_region
          %s1094 = smul.u32 2, %s21
          %p1095 = scmp.lt.s32.totalorder %s1094, 3
          %s1096 = scalar_select %p1095, %s1094, 3
          %s1097 = smul.addr %s1096, 2
          %s1098 = scalar_lea.vmem %s9, %s1097
        $region91: #{position_net_forward.1} parent=86 // pred_fallthru
          _
      $region87: #{position_net_forward.1} parent=5 // pred_fallthru
        _
    $region6: #{position_net_forward.1} parent=1 // loop_footer
      %s19 = sadd.s32 1, %s15
    $region7: #{position_net_forward.1} parent=1 // loop_footer_branch
      %14 = sbr.rel target = $region3
    $region8: #{position_net_forward.1} parent=1 // loop_exit
      _

</llo_original>
